<compile_context>
chip_gen: v6e
topology: v6e:2x2x1
jax: 0.10.0
libtpu: 0.0.40
codegen_flags: <defaults>
</compile_context>

<pallas_src>
import jax
import jax.numpy as jnp
import numpy as np
from jax.experimental import pallas as pl
from jax.experimental.pallas import tpu as pltpu

LOG_STD_MIN = -20.0
LOG_STD_MAX = 2.0

STATE_DIM = 3          # Pendulum-v1 observation dim
H1 = 400
H2 = 300
ACT_DIM = 1

# Lane-aligned (padded) dims actually used by the kernel.
H1_PAD = 512           # 400 -> 4 * 128
H2_PAD = 384           # 300 -> 3 * 128
HEAD_PAD = 128         # fused heads: lane 0 = mu, lane 1 = log_std, rest zero

_F32_BIG = float(np.finfo(np.float32).max)


def _round_up(n, m):
    return ((n + m - 1) // m) * m


def _policy_kernel(x_ref, w1_ref, b1_ref, w2_ref, b2_ref, wh_ref, bh_ref, out_ref):
    """One batch tile: VPU layer-1, two MXU matmuls, fused lane-dense heads."""
    x = x_ref[...]                                             # (TB, 3) f32

    # Layer 1 on the VPU: with K=3 an MXU matmul is nearly all fill/drain
    # latency, so three broadcast FMAs over the (TB, H1_PAD) slab win and keep
    # one MXU round-trip off the critical path.
    h1 = (x[:, 0:1] * w1_ref[0:1, :]
          + x[:, 1:2] * w1_ref[1:2, :]
          + x[:, 2:3] * w1_ref[2:3, :]
          + b1_ref[...])
    h1 = jnp.maximum(h1, 0.0)                                  # (TB, 512) f32

    # Layer 2 on the MXU: bf16 operands, f32 accumulation; bias/ReLU in f32.
    h2 = jnp.dot(h1.astype(jnp.bfloat16), w2_ref[...],
                 preferred_element_type=jnp.float32) + b2_ref[...]
    h2 = jnp.maximum(h2, 0.0)                                  # (TB, 384) f32

    # Fused mu/log_std heads -> one lane-dense (TB, 128) result.
    head = jnp.dot(h2.astype(jnp.bfloat16), wh_ref[...],
                   preferred_element_type=jnp.float32) + bh_ref[0:1, :]

    # Lane-wise clamp via precomputed bound rows: only the log_std lane has
    # finite bounds (-20 / 2); every other lane is clamped against
    # -/+finfo.max and passes through unchanged.  One max + one min on the VPU.
    head = jnp.maximum(head, bh_ref[1:2, :])
    head = jnp.minimum(head, bh_ref[2:3, :])
    out_ref[...] = head

    # TODO(synk): fuse the SAC sampling epilogue (exp(log_std), rsample via
    # pltpu.prng_seed/prng_random_bits, tanh squash, log_prob correction) into
    # this kernel to amortize launch overhead at small B; the EUP slot is idle
    # here so that work would be essentially free.  Left out to keep the
    # module's forward() semantics (returns mu, log_std).


def policy_forward(x, params, *, tb=None):
    """Full PolicyNetwork forward in one Pallas call with a batch grid.

    x: (B, STATE_DIM) float32.  Returns (mu, log_std), each (B, 1) float32.
    Weights (< 1 MiB total) stay VMEM-resident across grid steps (constant
    index_map); per-step VMEM is O(TB) so arbitrary B compiles on every TPU
    generation, and the batch axis is marked "parallel" so v7x's two
    TensorCores split large rollouts.
    """
    B = x.shape[0]
    w1, b1, w2, b2, wh, bh_aux = params

    # Batch tile: big enough to fill the 256-wide MXU and amortize per-step
    # overhead, small enough (<= 512 rows -> ~2.5 MiB of f32 intermediates)
    # to sit comfortably inside even v7x's 64 MiB VMEM / v5e's 16 MiB scoped
    # default alongside the resident weights and double-buffered x/out tiles.
    if tb is None:
        tb = min(512, _round_up(max(B, 1), 8))
    tb = _round_up(tb, 8)

    b_pad = _round_up(B, tb)
    if b_pad != B:
        x = jnp.pad(x, ((0, b_pad - B), (0, 0)))   # zero rows -> inert padding
    grid = (b_pad // tb,)

    def resident(arr):
        # Whole-array block, constant index map: DMA'd once, stays in VMEM.
        return pl.BlockSpec(arr.shape, lambda i: (0, 0))

    in_specs = [
        pl.BlockSpec((tb, STATE_DIM), lambda i: (i, 0)),       # x: batch-tiled
        resident(w1), resident(b1),
        resident(w2), resident(b2),
        resident(wh), resident(bh_aux),
    ]
    out_specs = pl.BlockSpec((tb, HEAD_PAD), lambda i: (i, 0))

    flops = 2 * b_pad * (STATE_DIM * H1_PAD + H1_PAD * H2_PAD + H2_PAD * HEAD_PAD)
    bytes_accessed = int(
        sum(int(np.prod(a.shape)) * a.dtype.itemsize for a in (x, *params))
        + b_pad * HEAD_PAD * 4
    )

    head = pl.pallas_call(
        _policy_kernel,
        out_shape=jax.ShapeDtypeStruct((b_pad, HEAD_PAD), jnp.float32),
        grid_spec=pltpu.PrefetchScalarGridSpec(
            num_scalar_prefetch=0,
            grid=grid,
            in_specs=in_specs,
            out_specs=out_specs,
        ),
        compiler_params=pltpu.CompilerParams(
            dimension_semantics=("parallel",),
        ),
        cost_estimate=pl.CostEstimate(
            flops=flops, transcendentals=0, bytes_accessed=bytes_accessed),
    )(x, w1, b1, w2, b2, wh, bh_aux)

    # Wrapper-side slices of the lane-dense slab are free layout plumbing.
    mu = head[:B, 0:1]
    log_std = head[:B, 1:2]
    return mu, log_std


def init_params(key):
    """PyTorch nn.Linear-style init (U[-1/sqrt(fan_in), +1/sqrt(fan_in)]),
    stored (in, out), zero-padded to lane-aligned dims, heads fused, clamp
    bounds baked into the head-aux array, MXU-fed weights cast to bfloat16."""
    def linear(key, fan_in, fan_out):
        kw, kb = jax.random.split(key)
        bound = 1.0 / np.sqrt(fan_in)
        w = jax.random.uniform(kw, (fan_in, fan_out), jnp.float32, -bound, bound)
        b = jax.random.uniform(kb, (1, fan_out), jnp.float32, -bound, bound)
        return w, b

    k1, k2, k3, k4 = jax.random.split(key, 4)
    w1, b1 = linear(k1, STATE_DIM, H1)
    w2, b2 = linear(k2, H1, H2)
    wmu, bmu = linear(k3, H2, ACT_DIM)
    wls, bls = linear(k4, H2, ACT_DIM)

    # Zero-pad feature dims (padding is inert: ReLU(0)=0, zero weight rows/cols).
    w1p = jnp.zeros((STATE_DIM, H1_PAD), jnp.float32).at[:, :H1].set(w1)
    b1p = jnp.zeros((1, H1_PAD), jnp.float32).at[:, :H1].set(b1)
    w2p = jnp.zeros((H1_PAD, H2_PAD), jnp.float32).at[:H1, :H2].set(w2)
    b2p = jnp.zeros((1, H2_PAD), jnp.float32).at[:, :H2].set(b2)

    # Fused, lane-dense head: lane 0 = mu head, lane 1 = log_std head.
    whp = jnp.zeros((H2_PAD, HEAD_PAD), jnp.float32)
    whp = whp.at[:H2, 0:1].set(wmu).at[:H2, 1:2].set(wls)

    # Head-aux: row 0 = fused bias, rows 1/2 = per-lane clamp bounds
    # (finite "no-op" bounds everywhere except the log_std lane).
    bh_aux = jnp.zeros((3, HEAD_PAD), jnp.float32)
    bh_aux = bh_aux.at[0, 0].set(bmu[0, 0]).at[0, 1].set(bls[0, 0])
    bh_aux = bh_aux.at[1, :].set(-_F32_BIG).at[1, 1].set(LOG_STD_MIN)
    bh_aux = bh_aux.at[2, :].set(_F32_BIG).at[2, 1].set(LOG_STD_MAX)

    # bf16 storage for the big MXU-fed weights (halves HBM DMA bytes);
    # w1 stays f32 since layer 1 runs on the VPU.
    return (w1p, b1p,
            w2p.astype(jnp.bfloat16), b2p,
            whp.astype(jnp.bfloat16), bh_aux)


def policy_forward_ref(x, params):
    """Pure-JAX reference mirroring the kernel's numerics (bf16 MXU dots,
    f32 accumulation / bias / ReLU / clip)."""
    w1, b1, w2, b2, wh, bh_aux = params
    h1 = jnp.maximum(x @ w1 + b1, 0.0)
    h2 = jnp.maximum(
        jnp.dot(h1.astype(jnp.bfloat16), w2,
                preferred_element_type=jnp.float32) + b2, 0.0)
    head = jnp.dot(h2.astype(jnp.bfloat16), wh,
                   preferred_element_type=jnp.float32) + bh_aux[0:1, :]
    mu = head[:, 0:1]
    ls = jnp.clip(head[:, 1:2], LOG_STD_MIN, LOG_STD_MAX)
    return mu, ls


if __name__ == "__main__":
    key = jax.random.PRNGKey(0)
    kp, kx1, kx2 = jax.random.split(key, 3)

    params = init_params(kp)

    # Case 1: tiny latency-bound rollout batch (one sublane tile, grid of 1).
    B = 8
    x = jax.random.normal(kx1, (B, STATE_DIM), jnp.float32)
    mu, log_std = jax.block_until_ready(policy_forward(x, params))

    mu_ref, log_std_ref = policy_forward_ref(x, params)
    np.testing.assert_allclose(np.asarray(mu), np.asarray(mu_ref),
                               rtol=5e-3, atol=5e-3)
    np.testing.assert_allclose(np.asarray(log_std), np.asarray(log_std_ref),
                               rtol=5e-3, atol=5e-3)
    assert mu.shape == (B, ACT_DIM) and log_std.shape == (B, ACT_DIM)
    assert float(jnp.max(log_std)) <= LOG_STD_MAX + 1e-6
    assert float(jnp.min(log_std)) >= LOG_STD_MIN - 1e-6

    # Case 2: batched path exercising the batch grid (multiple pipelined
    # steps + a zero-padded final tile that gets sliced away).
    B2 = 200
    x2 = jax.random.normal(kx2, (B2, STATE_DIM), jnp.float32)
    mu2, ls2 = jax.block_until_ready(policy_forward(x2, params, tb=64))

    mu2_ref, ls2_ref = policy_forward_ref(x2, params)
    np.testing.assert_allclose(np.asarray(mu2), np.asarray(mu2_ref),
                               rtol=5e-3, atol=5e-3)
    np.testing.assert_allclose(np.asarray(ls2), np.asarray(ls2_ref),
                               rtol=5e-3, atol=5e-3)
    assert mu2.shape == (B2, ACT_DIM) and ls2.shape == (B2, ACT_DIM)

    print("KERNEL_OK")
</pallas_src>

<mosaic_0001>
module attributes {stable_mosaic.version = 11 : i64} {
  func.func @_policy_kernel(%arg0: i32, %arg1: memref<8x3xf32, #tpu.memory_space<vmem>>, %arg2: memref<3x512xf32, #tpu.memory_space<vmem>>, %arg3: memref<1x512xf32, #tpu.memory_space<vmem>>, %arg4: memref<512x384xbf16, #tpu.memory_space<vmem>>, %arg5: memref<1x384xf32, #tpu.memory_space<vmem>>, %arg6: memref<384x128xbf16, #tpu.memory_space<vmem>>, %arg7: memref<3x128xf32, #tpu.memory_space<vmem>>, %arg8: memref<8x128xf32, #tpu.memory_space<vmem>>) attributes {dimension_semantics = [#tpu.dimension_semantics<parallel>], iteration_bounds = array<i64: 1>, scalar_prefetch = 0 : i64, scratch_operands = 0 : i64, tpu.core_type = #tpu.core_type<tc>, window_params = [{transform_indices = @transform_0, window_bounds = array<i64: 8, 3>}, {pipeline_mode = #tpu.pipeline_mode<synchronous>, transform_indices = @transform_1, window_bounds = array<i64: 3, 512>}, {pipeline_mode = #tpu.pipeline_mode<synchronous>, transform_indices = @transform_2, window_bounds = array<i64: 1, 512>}, {pipeline_mode = #tpu.pipeline_mode<synchronous>, transform_indices = @transform_3, window_bounds = array<i64: 512, 384>}, {pipeline_mode = #tpu.pipeline_mode<synchronous>, transform_indices = @transform_4, window_bounds = array<i64: 1, 384>}, {pipeline_mode = #tpu.pipeline_mode<synchronous>, transform_indices = @transform_5, window_bounds = array<i64: 384, 128>}, {pipeline_mode = #tpu.pipeline_mode<synchronous>, transform_indices = @transform_6, window_bounds = array<i64: 3, 128>}, {transform_indices = @transform_7, window_bounds = array<i64: 8, 128>}]} {
    %c0 = arith.constant 0 : index
    %c0_0 = arith.constant 0 : index
    %0 = vector.load %arg1[%c0, %c0_0] : memref<8x3xf32, #tpu.memory_space<vmem>>, vector<8x3xf32>
    %1 = vector.extract_strided_slice %0 {offsets = [0, 0], sizes = [8, 1], strides = [1, 1]} : vector<8x3xf32> to vector<8x1xf32>
    %c0_1 = arith.constant 0 : index
    %c0_2 = arith.constant 0 : index
    %2 = vector.load %arg2[%c0_1, %c0_2] : memref<3x512xf32, #tpu.memory_space<vmem>>, vector<1x512xf32>
    %3 = vector.broadcast %1 : vector<8x1xf32> to vector<8x512xf32>
    %4 = vector.broadcast %2 : vector<1x512xf32> to vector<8x512xf32>
    %5 = arith.mulf %3, %4 : vector<8x512xf32>
    %6 = vector.extract_strided_slice %0 {offsets = [0, 1], sizes = [8, 1], strides = [1, 1]} : vector<8x3xf32> to vector<8x1xf32>
    %c1 = arith.constant 1 : index
    %c0_3 = arith.constant 0 : index
    %7 = vector.load %arg2[%c1, %c0_3] : memref<3x512xf32, #tpu.memory_space<vmem>>, vector<1x512xf32>
    %8 = vector.broadcast %6 : vector<8x1xf32> to vector<8x512xf32>
    %9 = vector.broadcast %7 : vector<1x512xf32> to vector<8x512xf32>
    %10 = arith.mulf %8, %9 : vector<8x512xf32>
    %11 = arith.addf %5, %10 : vector<8x512xf32>
    %12 = vector.extract_strided_slice %0 {offsets = [0, 2], sizes = [8, 1], strides = [1, 1]} : vector<8x3xf32> to vector<8x1xf32>
    %c2 = arith.constant 2 : index
    %c0_4 = arith.constant 0 : index
    %13 = vector.load %arg2[%c2, %c0_4] : memref<3x512xf32, #tpu.memory_space<vmem>>, vector<1x512xf32>
    %14 = vector.broadcast %12 : vector<8x1xf32> to vector<8x512xf32>
    %15 = vector.broadcast %13 : vector<1x512xf32> to vector<8x512xf32>
    %16 = arith.mulf %14, %15 : vector<8x512xf32>
    %17 = arith.addf %11, %16 : vector<8x512xf32>
    %c0_5 = arith.constant 0 : index
    %c0_6 = arith.constant 0 : index
    %18 = vector.load %arg3[%c0_5, %c0_6] : memref<1x512xf32, #tpu.memory_space<vmem>>, vector<1x512xf32>
    %19 = vector.broadcast %18 : vector<1x512xf32> to vector<8x512xf32>
    %20 = arith.addf %17, %19 : vector<8x512xf32>
    %cst = arith.constant 0.000000e+00 : f32
    %21 = vector.broadcast %cst : f32 to vector<8x512xf32>
    %22 = arith.maximumf %20, %21 : vector<8x512xf32>
    %23 = arith.truncf %22 : vector<8x512xf32> to vector<8x512xbf16>
    %c0_7 = arith.constant 0 : index
    %c0_8 = arith.constant 0 : index
    %24 = vector.load %arg4[%c0_7, %c0_8] : memref<512x384xbf16, #tpu.memory_space<vmem>>, vector<512x384xbf16>
    %cst_9 = arith.constant dense<0.000000e+00> : vector<8x384xf32>
    %25 = tpu.matmul %23, %24, %cst_9 {dimension_numbers = #tpu.dot_dimension_numbers<[1], [0], [0], [1], [0, 0, 1, 1], [], []>} : vector<8x512xbf16>, vector<512x384xbf16>, vector<8x384xf32> -> vector<8x384xf32>
    %c0_10 = arith.constant 0 : index
    %c0_11 = arith.constant 0 : index
    %26 = vector.load %arg5[%c0_10, %c0_11] : memref<1x384xf32, #tpu.memory_space<vmem>>, vector<1x384xf32>
    %27 = vector.broadcast %26 : vector<1x384xf32> to vector<8x384xf32>
    %28 = arith.addf %25, %27 : vector<8x384xf32>
    %cst_12 = arith.constant 0.000000e+00 : f32
    %29 = vector.broadcast %cst_12 : f32 to vector<8x384xf32>
    %30 = arith.maximumf %28, %29 : vector<8x384xf32>
    %31 = arith.truncf %30 : vector<8x384xf32> to vector<8x384xbf16>
    %c0_13 = arith.constant 0 : index
    %c0_14 = arith.constant 0 : index
    %32 = vector.load %arg6[%c0_13, %c0_14] : memref<384x128xbf16, #tpu.memory_space<vmem>>, vector<384x128xbf16>
    %cst_15 = arith.constant dense<0.000000e+00> : vector<8x128xf32>
    %33 = tpu.matmul %31, %32, %cst_15 {dimension_numbers = #tpu.dot_dimension_numbers<[1], [0], [0], [1], [0, 0, 1, 1], [], []>} : vector<8x384xbf16>, vector<384x128xbf16>, vector<8x128xf32> -> vector<8x128xf32>
    %c0_16 = arith.constant 0 : index
    %c0_17 = arith.constant 0 : index
    %34 = vector.load %arg7[%c0_16, %c0_17] : memref<3x128xf32, #tpu.memory_space<vmem>>, vector<1x128xf32>
    %35 = vector.broadcast %34 : vector<1x128xf32> to vector<8x128xf32>
    %36 = arith.addf %33, %35 : vector<8x128xf32>
    %c1_18 = arith.constant 1 : index
    %c0_19 = arith.constant 0 : index
    %37 = vector.load %arg7[%c1_18, %c0_19] : memref<3x128xf32, #tpu.memory_space<vmem>>, vector<1x128xf32>
    %38 = vector.broadcast %37 : vector<1x128xf32> to vector<8x128xf32>
    %39 = arith.maximumf %36, %38 : vector<8x128xf32>
    %c2_20 = arith.constant 2 : index
    %c0_21 = arith.constant 0 : index
    %40 = vector.load %arg7[%c2_20, %c0_21] : memref<3x128xf32, #tpu.memory_space<vmem>>, vector<1x128xf32>
    %41 = vector.broadcast %40 : vector<1x128xf32> to vector<8x128xf32>
    %42 = arith.minimumf %39, %41 : vector<8x128xf32>
    %c0_22 = arith.constant 0 : index
    %c0_23 = arith.constant 0 : index
    %43 = vector.load %arg8[%c0_22, %c0_23] : memref<8x128xf32, #tpu.memory_space<vmem>>, vector<8x128xf32>
    tpu.vector_store %arg8[%c0_22, %c0_23], %42 {strides = array<i32>} : memref<8x128xf32, #tpu.memory_space<vmem>>, vector<8x128xf32>,
    return
  }
  func.func @transform_0(%arg0: i32) -> (i32, i32) {
    %c0_i32 = arith.constant 0 : i32
    %c0_i32_0 = arith.constant 0 : i32
    return %arg0, %c0_i32 : i32, i32
  }
  func.func @transform_1(%arg0: i32) -> (i32, i32) {
    %c0_i32 = arith.constant 0 : i32
    %c0_i32_0 = arith.constant 0 : i32
    %c0_i32_1 = arith.constant 0 : i32
    return %c0_i32, %c0_i32_0 : i32, i32
  }
  func.func @transform_2(%arg0: i32) -> (i32, i32) {
    %c0_i32 = arith.constant 0 : i32
    %c0_i32_0 = arith.constant 0 : i32
    %c0_i32_1 = arith.constant 0 : i32
    return %c0_i32, %c0_i32_0 : i32, i32
  }
  func.func @transform_3(%arg0: i32) -> (i32, i32) {
    %c0_i32 = arith.constant 0 : i32
    %c0_i32_0 = arith.constant 0 : i32
    %c0_i32_1 = arith.constant 0 : i32
    return %c0_i32, %c0_i32_0 : i32, i32
  }
  func.func @transform_4(%arg0: i32) -> (i32, i32) {
    %c0_i32 = arith.constant 0 : i32
    %c0_i32_0 = arith.constant 0 : i32
    %c0_i32_1 = arith.constant 0 : i32
    return %c0_i32, %c0_i32_0 : i32, i32
  }
  func.func @transform_5(%arg0: i32) -> (i32, i32) {
    %c0_i32 = arith.constant 0 : i32
    %c0_i32_0 = arith.constant 0 : i32
    %c0_i32_1 = arith.constant 0 : i32
    return %c0_i32, %c0_i32_0 : i32, i32
  }
  func.func @transform_6(%arg0: i32) -> (i32, i32) {
    %c0_i32 = arith.constant 0 : i32
    %c0_i32_0 = arith.constant 0 : i32
    %c0_i32_1 = arith.constant 0 : i32
    return %c0_i32, %c0_i32_0 : i32, i32
  }
  func.func @transform_7(%arg0: i32) -> (i32, i32) {
    %c0_i32 = arith.constant 0 : i32
    %c0_i32_0 = arith.constant 0 : i32
    return %arg0, %c0_i32 : i32, i32
  }
}

</mosaic_0001>

<llo_original>
// kernel: tpu_custom_call.1
$region0: #{tpu_custom_call.1}
  #allocation0 [shape = 'u32[]', space=smem, size = 0x4, offset = 0x4, fixed_abs, tag = 'smem constant byte address 0x4 - core index']
  #allocation1 [shape = 'u32[144,128]{1,0:T(1,128)}', space=vmem, size = 0x12000, scoped, tag = 'internal scratch']
  %s0 = inlined_call_operand.vmem [shape: f32[8,3], index: 0, kind: input, shape index: {}]
  %s1 = inlined_call_operand.hbm [shape: f32[3,512], index: 1, kind: input, shape index: {}]
  %s2 = inlined_call_operand.vmem [shape: f32[1,512], index: 2, kind: input, shape index: {}]
  %s3 = inlined_call_operand.hbm [shape: bf16[512,384], index: 3, kind: input, shape index: {}]
  %s4 = inlined_call_operand.vmem [shape: f32[1,384], index: 4, kind: input, shape index: {}]
  %s5 = inlined_call_operand.hbm [shape: bf16[384,128], index: 5, kind: input, shape index: {}]
  %s6 = inlined_call_operand.vmem [shape: f32[3,128], index: 6, kind: input, shape index: {}]
  %s7 = inlined_call_operand.hbm [shape: f32[8,128], index: 7, kind: output, shape index: {}]
  %s8 = sld [smem:[#allocation0]]
  $region50: #{tpu_custom_call.1} parent=0
    _
  %s10 = ssub.s32 1, %s8
  %s11 = scalar_select 0, %s10, %s8
  $region1: #{tpu_custom_call.1} parent=0
    #allocation2 [shape = 'u8[8192]{0}', space=vmem, size = 0x2000, scoped, tag = 'input window, operand 1, single buffered']
    #allocation3 [shape = 's32[1]{0}', space=sflag, size = 0x4, scoped, tag = 'scoped memory for tpu_custom_call.1']
    #allocation4 [shape = 's32[1]{0}', space=sflag, size = 0x4, scoped, tag = 'scoped memory for tpu_custom_call.1']
    #allocation5 [shape = 'u8[393216]{0}', space=vmem, size = 0x60000, scoped, tag = 'input window, operand 3, single buffered']
    #allocation6 [shape = 's32[1]{0}', space=sflag, size = 0x4, scoped, tag = 'scoped memory for tpu_custom_call.1']
    #allocation7 [shape = 'u8[98304]{0}', space=vmem, size = 0x18000, scoped, tag = 'input window, operand 5, single buffered']
    #allocation8 [shape = 'u8[4096]{0}', space=vmem, size = 0x1000, scoped, tag = 'output window, operand 0, single buffered']
    %12 = vsyncpa [#allocation3], 0
    %13 = vsyncpa [#allocation6], 0
    %14 = vsyncpa [#allocation4], 0
    // Predicated region
    $region2: #{tpu_custom_call.1} parent=1 // pred_check
      _
    $region3: #{tpu_custom_call.1} parent=1 // pred_check_branch
      %16 = sbr.rel (0) target = $region5
    $region4: #{tpu_custom_call.1} parent=1 // pred_region
      _
    $region5: #{tpu_custom_call.1} parent=1 // pred_fallthru
      _
    // Predicated region
    $region6: #{tpu_custom_call.1} parent=1 // pred_check
      _
    $region7: #{tpu_custom_call.1} parent=1 // pred_check_branch
      %18 = sbr.rel (0) target = $region9
    $region8: #{tpu_custom_call.1} parent=1 // pred_region
      %s20 = ssub.s32 256, 256
      %21 = vsyncadd [#allocation3], %s20
      %s23 = sshll.u32 [#allocation2], 4
      %s24 = int_to_ptr.vmem [resolvable:$true] %s23
      %26 = dma.hbm_to_vmem [thread:$0]  %s1, 256, %s24, [#allocation3]
    $region9: #{tpu_custom_call.1} parent=1 // pred_fallthru
      _
    // Predicated region
    $region10: #{tpu_custom_call.1} parent=1 // pred_check
      _
    $region11: #{tpu_custom_call.1} parent=1 // pred_check_branch
      %28 = sbr.rel (0) target = $region13
    $region12: #{tpu_custom_call.1} parent=1 // pred_region
      _
    $region13: #{tpu_custom_call.1} parent=1 // pred_fallthru
      _
    // Predicated region
    $region14: #{tpu_custom_call.1} parent=1 // pred_check
      _
    $region15: #{tpu_custom_call.1} parent=1 // pred_check_branch
      %30 = sbr.rel (0) target = $region17
    $region16: #{tpu_custom_call.1} parent=1 // pred_region
      %s32 = ssub.s32 12288, 12288
      %33 = vsyncadd [#allocation6], %s32
      %s34 = sshll.u32 [#allocation5], 4
      %s35 = int_to_ptr.vmem [resolvable:$true] %s34
      %40 = dma.hbm_to_vmem [thread:$0]  %s3, 12288, %s35, [#allocation6], 192, 192, 12
    $region17: #{tpu_custom_call.1} parent=1 // pred_fallthru
      _
    // Predicated region
    $region18: #{tpu_custom_call.1} parent=1 // pred_check
      _
    $region19: #{tpu_custom_call.1} parent=1 // pred_check_branch
      %42 = sbr.rel (0) target = $region21
    $region20: #{tpu_custom_call.1} parent=1 // pred_region
      _
    $region21: #{tpu_custom_call.1} parent=1 // pred_fallthru
      _
    // Predicated region
    $region22: #{tpu_custom_call.1} parent=1 // pred_check
      _
    $region23: #{tpu_custom_call.1} parent=1 // pred_check_branch
      %44 = sbr.rel (0) target = $region25
    $region24: #{tpu_custom_call.1} parent=1 // pred_region
      %s46 = ssub.s32 3072, 3072
      %47 = vsyncadd [#allocation6], %s46
      %s48 = sshll.u32 [#allocation7], 4
      %s49 = int_to_ptr.vmem [resolvable:$true] %s48
      %54 = dma.hbm_to_vmem [thread:$0]  %s5, 3072, %s49, [#allocation6], 64, 64, 4
    $region25: #{tpu_custom_call.1} parent=1 // pred_fallthru
      _
    // Predicated region
    $region26: #{tpu_custom_call.1} parent=1 // pred_check
      _
    $region27: #{tpu_custom_call.1} parent=1 // pred_check_branch
      %56 = sbr.rel (0) target = $region29
    $region28: #{tpu_custom_call.1} parent=1 // pred_region
      _
    $region29: #{tpu_custom_call.1} parent=1 // pred_fallthru
      _
    // Predicated region
    $region30: #{tpu_custom_call.1} parent=1 // pred_check
      _
    $region31: #{tpu_custom_call.1} parent=1 // pred_check_branch
      %58 = sbr.rel (0) target = $region33
    $region32: #{tpu_custom_call.1} parent=1 // pred_region
      %59 = dma.done [#allocation3], 256
    $region33: #{tpu_custom_call.1} parent=1 // pred_fallthru
      _
    // Predicated region
    $region34: #{tpu_custom_call.1} parent=1 // pred_check
      _
    $region35: #{tpu_custom_call.1} parent=1 // pred_check_branch
      %61 = sbr.rel (0) target = $region37
    $region36: #{tpu_custom_call.1} parent=1 // pred_region
      %62 = dma.done [#allocation6], 12288
    $region37: #{tpu_custom_call.1} parent=1 // pred_fallthru
      _
    // Predicated region
    $region38: #{tpu_custom_call.1} parent=1 // pred_check
      _
    $region39: #{tpu_custom_call.1} parent=1 // pred_check_branch
      %64 = sbr.rel (0) target = $region41
    $region40: #{tpu_custom_call.1} parent=1 // pred_region
      %65 = dma.done [#allocation6], 3072
    $region41: #{tpu_custom_call.1} parent=1 // pred_fallthru
      _
    %v67 = vld [vmem:[%s0] sm:$0xff]
    %v68 = vld [vmem:[#allocation2] ss:$4 sm:$0xf]
    %70 = vset.pattern.permute.xlu0 0
    %71 = vperm.xlu0 %70, %v67
    %v72 = vpop.permute.xlu0 %71
    %v75 = vlaneseq
    %v76 = vshrl.u32 %v75, 7
    %v77 = vsub.s32 0, %v76
    %v78 = vrot.slane %v68, %v77
    %v79 = vlaneseq
    %v80 = vshrl.u32 %v79, 7
    %v81 = vsub.s32 1, %v80
    %v82 = vrot.slane %v68, %v81
    %v83 = vlaneseq
    %v84 = vshrl.u32 %v83, 7
    %v85 = vsub.s32 2, %v84
    %v86 = vrot.slane %v68, %v85
    %v87 = vlaneseq
    %v88 = vshrl.u32 %v87, 7
    %v89 = vsub.s32 3, %v88
    %v90 = vrot.slane %v68, %v89
    %v95 = vmul.f32 %v72, %v78
    %v96 = vmul.f32 %v72, %v82
    %v97 = vmul.f32 %v72, %v86
    %v98 = vmul.f32 %v72, %v90
    %s99 = scalar_lea.vmem [#allocation2], 1
    %v100 = vld [vmem:[%s99] ss:$4 sm:$0xf]
    %101 = vset.pattern.permute.xlu0 1
    %102 = vperm.xlu0 %101, %v67
    %v103 = vpop.permute.xlu0 %102
    %v106 = vlaneseq
    %v107 = vshrl.u32 %v106, 7
    %v108 = vsub.s32 0, %v107
    %v109 = vrot.slane %v100, %v108
    %v110 = vlaneseq
    %v111 = vshrl.u32 %v110, 7
    %v112 = vsub.s32 1, %v111
    %v113 = vrot.slane %v100, %v112
    %v114 = vlaneseq
    %v115 = vshrl.u32 %v114, 7
    %v116 = vsub.s32 2, %v115
    %v117 = vrot.slane %v100, %v116
    %v118 = vlaneseq
    %v119 = vshrl.u32 %v118, 7
    %v120 = vsub.s32 3, %v119
    %v121 = vrot.slane %v100, %v120
    %v126 = vmul.f32 %v103, %v109
    %v127 = vmul.f32 %v103, %v113
    %v128 = vmul.f32 %v103, %v117
    %v129 = vmul.f32 %v103, %v121
    %v130 = vadd.f32 %v95, %v126
    %v131 = vadd.f32 %v96, %v127
    %v132 = vadd.f32 %v97, %v128
    %v133 = vadd.f32 %v98, %v129
    %s134 = scalar_lea.vmem [#allocation2], 2
    %v135 = vld [vmem:[%s134] ss:$4 sm:$0xf]
    %136 = vset.pattern.permute.xlu0 2
    %137 = vperm.xlu0 %136, %v67
    %v138 = vpop.permute.xlu0 %137
    %v141 = vlaneseq
    %v142 = vshrl.u32 %v141, 7
    %v143 = vsub.s32 0, %v142
    %v144 = vrot.slane %v135, %v143
    %v145 = vlaneseq
    %v146 = vshrl.u32 %v145, 7
    %v147 = vsub.s32 1, %v146
    %v148 = vrot.slane %v135, %v147
    %v149 = vlaneseq
    %v150 = vshrl.u32 %v149, 7
    %v151 = vsub.s32 2, %v150
    %v152 = vrot.slane %v135, %v151
    %v153 = vlaneseq
    %v154 = vshrl.u32 %v153, 7
    %v155 = vsub.s32 3, %v154
    %v156 = vrot.slane %v135, %v155
    %v161 = vmul.f32 %v138, %v144
    %v162 = vmul.f32 %v138, %v148
    %v163 = vmul.f32 %v138, %v152
    %v164 = vmul.f32 %v138, %v156
    %v165 = vadd.f32 %v130, %v161
    %v166 = vadd.f32 %v131, %v162
    %v167 = vadd.f32 %v132, %v163
    %v168 = vadd.f32 %v133, %v164
    %v169 = vld [vmem:[%s2] sm:$0xf]
    %v171 = vlaneseq
    %v172 = vshrl.u32 %v171, 7
    %v173 = vsub.s32 0, %v172
    %v174 = vrot.slane %v169, %v173
    %v175 = vlaneseq
    %v176 = vshrl.u32 %v175, 7
    %v177 = vsub.s32 1, %v176
    %v178 = vrot.slane %v169, %v177
    %v179 = vlaneseq
    %v180 = vshrl.u32 %v179, 7
    %v181 = vsub.s32 2, %v180
    %v182 = vrot.slane %v169, %v181
    %v183 = vlaneseq
    %v184 = vshrl.u32 %v183, 7
    %v185 = vsub.s32 3, %v184
    %v186 = vrot.slane %v169, %v185
    %v191 = vadd.f32 %v165, %v174
    %v192 = vadd.f32 %v166, %v178
    %v193 = vadd.f32 %v167, %v182
    %v194 = vadd.f32 %v168, %v186
    %v195 = vmax.f32 %v191, 0.0
    %v196 = vmax.f32 %v192, 0.0
    %v197 = vmax.f32 %v193, 0.0
    %v198 = vmax.f32 %v194, 0.0
    %v199 = vpack.c.bf16 %v195, %v195
    %v200 = vpack.c.bf16 %v196, %v196
    %v201 = vpack.c.bf16 %v197, %v197
    %v202 = vpack.c.bf16 %v198, %v198
    %v203 = vld [vmem:[#allocation5] sm:$0xff]
    %v204 = vld [vmem:[#allocation5 + $0x8] sm:$0xf]
    %v205 = vld [vmem:[#allocation5 + $0xc] sm:$0xff]
    %v206 = vld [vmem:[#allocation5 + $0x14] sm:$0xf]
    %v207 = vld [vmem:[#allocation5 + $0x18] sm:$0xff]
    %v208 = vld [vmem:[#allocation5 + $0x20] sm:$0xf]
    %v209 = vld [vmem:[#allocation5 + $0x24] sm:$0xff]
    %v210 = vld [vmem:[#allocation5 + $0x2c] sm:$0xf]
    %v211 = vld [vmem:[#allocation5 + $0x30] sm:$0xff]
    %v212 = vld [vmem:[#allocation5 + $0x38] sm:$0xf]
    %v213 = vld [vmem:[#allocation5 + $0x3c] sm:$0xff]
    %v214 = vld [vmem:[#allocation5 + $0x44] sm:$0xf]
    %v215 = vld [vmem:[#allocation5 + $0x48] sm:$0xff]
    %v216 = vld [vmem:[#allocation5 + $0x50] sm:$0xf]
    %v217 = vld [vmem:[#allocation5 + $0x54] sm:$0xff]
    %v218 = vld [vmem:[#allocation5 + $0x5c] sm:$0xf]
    %v219 = vld [vmem:[#allocation5 + $0x60] sm:$0xff]
    %v220 = vld [vmem:[#allocation5 + $0x68] sm:$0xf]
    %v221 = vld [vmem:[#allocation5 + $0x6c] sm:$0xff]
    %v222 = vld [vmem:[#allocation5 + $0x74] sm:$0xf]
    %v223 = vld [vmem:[#allocation5 + $0x78] sm:$0xff]
    %v224 = vld [vmem:[#allocation5 + $0x80] sm:$0xf]
    %v225 = vld [vmem:[#allocation5 + $0x84] sm:$0xff]
    %v226 = vld [vmem:[#allocation5 + $0x8c] sm:$0xf]
    %v227 = vld [vmem:[#allocation5 + $0x90] sm:$0xff]
    %v228 = vld [vmem:[#allocation5 + $0x98] sm:$0xf]
    %v229 = vld [vmem:[#allocation5 + $0x9c] sm:$0xff]
    %v230 = vld [vmem:[#allocation5 + $0xa4] sm:$0xf]
    %v231 = vld [vmem:[#allocation5 + $0xa8] sm:$0xff]
    %v232 = vld [vmem:[#allocation5 + $0xb0] sm:$0xf]
    %v233 = vld [vmem:[#allocation5 + $0xb4] sm:$0xff]
    %v234 = vld [vmem:[#allocation5 + $0xbc] sm:$0xf]
    %v235 = vld [vmem:[#allocation5 + $0xc0] sm:$0xff]
    %v236 = vld [vmem:[#allocation5 + $0xc8] sm:$0xf]
    %v237 = vld [vmem:[#allocation5 + $0xcc] sm:$0xff]
    %v238 = vld [vmem:[#allocation5 + $0xd4] sm:$0xf]
    %v239 = vld [vmem:[#allocation5 + $0xd8] sm:$0xff]
    %v240 = vld [vmem:[#allocation5 + $0xe0] sm:$0xf]
    %v241 = vld [vmem:[#allocation5 + $0xe4] sm:$0xff]
    %v242 = vld [vmem:[#allocation5 + $0xec] sm:$0xf]
    %v243 = vld [vmem:[#allocation5 + $0xf0] sm:$0xff]
    %v244 = vld [vmem:[#allocation5 + $0xf8] sm:$0xf]
    %v245 = vld [vmem:[#allocation5 + $0xfc] sm:$0xff]
    %v246 = vld [vmem:[#allocation5 + $0x104] sm:$0xf]
    %v247 = vld [vmem:[#allocation5 + $0x108] sm:$0xff]
    %v248 = vld [vmem:[#allocation5 + $0x110] sm:$0xf]
    %v249 = vld [vmem:[#allocation5 + $0x114] sm:$0xff]
    %v250 = vld [vmem:[#allocation5 + $0x11c] sm:$0xf]
    %v251 = vld [vmem:[#allocation5 + $0x120] sm:$0xff]
    %v252 = vld [vmem:[#allocation5 + $0x128] sm:$0xf]
    %v253 = vld [vmem:[#allocation5 + $0x12c] sm:$0xff]
    %v254 = vld [vmem:[#allocation5 + $0x134] sm:$0xf]
    %v255 = vld [vmem:[#allocation5 + $0x138] sm:$0xff]
    %v256 = vld [vmem:[#allocation5 + $0x140] sm:$0xf]
    %v257 = vld [vmem:[#allocation5 + $0x144] sm:$0xff]
    %v258 = vld [vmem:[#allocation5 + $0x14c] sm:$0xf]
    %v259 = vld [vmem:[#allocation5 + $0x150] sm:$0xff]
    %v260 = vld [vmem:[#allocation5 + $0x158] sm:$0xf]
    %v261 = vld [vmem:[#allocation5 + $0x15c] sm:$0xff]
    %v262 = vld [vmem:[#allocation5 + $0x164] sm:$0xf]
    %v263 = vld [vmem:[#allocation5 + $0x168] sm:$0xff]
    %v264 = vld [vmem:[#allocation5 + $0x170] sm:$0xf]
    %v265 = vld [vmem:[#allocation5 + $0x174] sm:$0xff]
    %v266 = vld [vmem:[#allocation5 + $0x17c] sm:$0xf]
    %v267 = vld [vmem:[#allocation5 + $0x180] sm:$0xff]
    %v268 = vld [vmem:[#allocation5 + $0x188] sm:$0xf]
    %v269 = vld [vmem:[#allocation5 + $0x18c] sm:$0xff]
    %v270 = vld [vmem:[#allocation5 + $0x194] sm:$0xf]
    %v271 = vld [vmem:[#allocation5 + $0x198] sm:$0xff]
    %v272 = vld [vmem:[#allocation5 + $0x1a0] sm:$0xf]
    %v273 = vld [vmem:[#allocation5 + $0x1a4] sm:$0xff]
    %v274 = vld [vmem:[#allocation5 + $0x1ac] sm:$0xf]
    %v275 = vld [vmem:[#allocation5 + $0x1b0] sm:$0xff]
    %v276 = vld [vmem:[#allocation5 + $0x1b8] sm:$0xf]
    %v277 = vld [vmem:[#allocation5 + $0x1bc] sm:$0xff]
    %v278 = vld [vmem:[#allocation5 + $0x1c4] sm:$0xf]
    %v279 = vld [vmem:[#allocation5 + $0x1c8] sm:$0xff]
    %v280 = vld [vmem:[#allocation5 + $0x1d0] sm:$0xf]
    %v281 = vld [vmem:[#allocation5 + $0x1d4] sm:$0xff]
    %v282 = vld [vmem:[#allocation5 + $0x1dc] sm:$0xf]
    %v283 = vld [vmem:[#allocation5 + $0x1e0] sm:$0xff]
    %v284 = vld [vmem:[#allocation5 + $0x1e8] sm:$0xf]
    %v285 = vld [vmem:[#allocation5 + $0x1ec] sm:$0xff]
    %v286 = vld [vmem:[#allocation5 + $0x1f4] sm:$0xf]
    %v287 = vld [vmem:[#allocation5 + $0x1f8] sm:$0xff]
    %v288 = vld [vmem:[#allocation5 + $0x200] sm:$0xf]
    %v289 = vld [vmem:[#allocation5 + $0x204] sm:$0xff]
    %v290 = vld [vmem:[#allocation5 + $0x20c] sm:$0xf]
    %v291 = vld [vmem:[#allocation5 + $0x210] sm:$0xff]
    %v292 = vld [vmem:[#allocation5 + $0x218] sm:$0xf]
    %v293 = vld [vmem:[#allocation5 + $0x21c] sm:$0xff]
    %v294 = vld [vmem:[#allocation5 + $0x224] sm:$0xf]
    %v295 = vld [vmem:[#allocation5 + $0x228] sm:$0xff]
    %v296 = vld [vmem:[#allocation5 + $0x230] sm:$0xf]
    %v297 = vld [vmem:[#allocation5 + $0x234] sm:$0xff]
    %v298 = vld [vmem:[#allocation5 + $0x23c] sm:$0xf]
    %v299 = vld [vmem:[#allocation5 + $0x240] sm:$0xff]
    %v300 = vld [vmem:[#allocation5 + $0x248] sm:$0xf]
    %v301 = vld [vmem:[#allocation5 + $0x24c] sm:$0xff]
    %v302 = vld [vmem:[#allocation5 + $0x254] sm:$0xf]
    %v303 = vld [vmem:[#allocation5 + $0x258] sm:$0xff]
    %v304 = vld [vmem:[#allocation5 + $0x260] sm:$0xf]
    %v305 = vld [vmem:[#allocation5 + $0x264] sm:$0xff]
    %v306 = vld [vmem:[#allocation5 + $0x26c] sm:$0xf]
    %v307 = vld [vmem:[#allocation5 + $0x270] sm:$0xff]
    %v308 = vld [vmem:[#allocation5 + $0x278] sm:$0xf]
    %v309 = vld [vmem:[#allocation5 + $0x27c] sm:$0xff]
    %v310 = vld [vmem:[#allocation5 + $0x284] sm:$0xf]
    %v311 = vld [vmem:[#allocation5 + $0x288] sm:$0xff]
    %v312 = vld [vmem:[#allocation5 + $0x290] sm:$0xf]
    %v313 = vld [vmem:[#allocation5 + $0x294] sm:$0xff]
    %v314 = vld [vmem:[#allocation5 + $0x29c] sm:$0xf]
    %v315 = vld [vmem:[#allocation5 + $0x2a0] sm:$0xff]
    %v316 = vld [vmem:[#allocation5 + $0x2a8] sm:$0xf]
    %v317 = vld [vmem:[#allocation5 + $0x2ac] sm:$0xff]
    %v318 = vld [vmem:[#allocation5 + $0x2b4] sm:$0xf]
    %v319 = vld [vmem:[#allocation5 + $0x2b8] sm:$0xff]
    %v320 = vld [vmem:[#allocation5 + $0x2c0] sm:$0xf]
    %v321 = vld [vmem:[#allocation5 + $0x2c4] sm:$0xff]
    %v322 = vld [vmem:[#allocation5 + $0x2cc] sm:$0xf]
    %v323 = vld [vmem:[#allocation5 + $0x2d0] sm:$0xff]
    %v324 = vld [vmem:[#allocation5 + $0x2d8] sm:$0xf]
    %v325 = vld [vmem:[#allocation5 + $0x2dc] sm:$0xff]
    %v326 = vld [vmem:[#allocation5 + $0x2e4] sm:$0xf]
    %v327 = vld [vmem:[#allocation5 + $0x2e8] sm:$0xff]
    %v328 = vld [vmem:[#allocation5 + $0x2f0] sm:$0xf]
    %v329 = vld [vmem:[#allocation5 + $0x2f4] sm:$0xff]
    %v330 = vld [vmem:[#allocation5 + $0x2fc] sm:$0xf]
    %v331 = vld [vmem:[%s4] sm:$0x7]
    %v333 = vlaneseq
    %v334 = vshrl.u32 %v333, 7
    %v335 = vsub.s32 0, %v334
    %v336 = vrot.slane %v331, %v335
    %v337 = vlaneseq
    %v338 = vshrl.u32 %v337, 7
    %v339 = vsub.s32 1, %v338
    %v340 = vrot.slane %v331, %v339
    %v341 = vlaneseq
    %v342 = vshrl.u32 %v341, 7
    %v343 = vsub.s32 2, %v342
    %v344 = vrot.slane %v331, %v343
    %v476 = vunpack.c.l.b16 %v203
    %v477 = vunpack.c.h.b16 %v203
    %v478 = vunpack.c.l.b16 %v204
    %v479 = vunpack.c.l.b16 %v205
    %v480 = vunpack.c.h.b16 %v205
    %v481 = vunpack.c.l.b16 %v206
    %v482 = vunpack.c.l.b16 %v207
    %v483 = vunpack.c.h.b16 %v207
    %v484 = vunpack.c.l.b16 %v208
    %v485 = vunpack.c.l.b16 %v209
    %v486 = vunpack.c.h.b16 %v209
    %v487 = vunpack.c.l.b16 %v210
    %v488 = vunpack.c.l.b16 %v211
    %v489 = vunpack.c.h.b16 %v211
    %v490 = vunpack.c.l.b16 %v212
    %v491 = vunpack.c.l.b16 %v213
    %v492 = vunpack.c.h.b16 %v213
    %v493 = vunpack.c.l.b16 %v214
    %v494 = vunpack.c.l.b16 %v215
    %v495 = vunpack.c.h.b16 %v215
    %v496 = vunpack.c.l.b16 %v216
    %v497 = vunpack.c.l.b16 %v217
    %v498 = vunpack.c.h.b16 %v217
    %v499 = vunpack.c.l.b16 %v218
    %v500 = vunpack.c.l.b16 %v219
    %v501 = vunpack.c.h.b16 %v219
    %v502 = vunpack.c.l.b16 %v220
    %v503 = vunpack.c.l.b16 %v221
    %v504 = vunpack.c.h.b16 %v221
    %v505 = vunpack.c.l.b16 %v222
    %v506 = vunpack.c.l.b16 %v223
    %v507 = vunpack.c.h.b16 %v223
    %v508 = vunpack.c.l.b16 %v224
    %v509 = vunpack.c.l.b16 %v225
    %v510 = vunpack.c.h.b16 %v225
    %v511 = vunpack.c.l.b16 %v226
    %v512 = vunpack.c.l.b16 %v227
    %v513 = vunpack.c.h.b16 %v227
    %v514 = vunpack.c.l.b16 %v228
    %v515 = vunpack.c.l.b16 %v229
    %v516 = vunpack.c.h.b16 %v229
    %v517 = vunpack.c.l.b16 %v230
    %v518 = vunpack.c.l.b16 %v231
    %v519 = vunpack.c.h.b16 %v231
    %v520 = vunpack.c.l.b16 %v232
    %v521 = vunpack.c.l.b16 %v233
    %v522 = vunpack.c.h.b16 %v233
    %v523 = vunpack.c.l.b16 %v234
    %v524 = vunpack.c.l.b16 %v235
    %v525 = vunpack.c.h.b16 %v235
    %v526 = vunpack.c.l.b16 %v236
    %v527 = vunpack.c.l.b16 %v237
    %v528 = vunpack.c.h.b16 %v237
    %v529 = vunpack.c.l.b16 %v238
    %v530 = vunpack.c.l.b16 %v239
    %v531 = vunpack.c.h.b16 %v239
    %v532 = vunpack.c.l.b16 %v240
    %v533 = vunpack.c.l.b16 %v241
    %v534 = vunpack.c.h.b16 %v241
    %v535 = vunpack.c.l.b16 %v242
    %v536 = vunpack.c.l.b16 %v243
    %v537 = vunpack.c.h.b16 %v243
    %v538 = vunpack.c.l.b16 %v244
    %v539 = vunpack.c.l.b16 %v245
    %v540 = vunpack.c.h.b16 %v245
    %v541 = vunpack.c.l.b16 %v246
    %v542 = vunpack.c.l.b16 %v247
    %v543 = vunpack.c.h.b16 %v247
    %v544 = vunpack.c.l.b16 %v248
    %v545 = vunpack.c.l.b16 %v249
    %v546 = vunpack.c.h.b16 %v249
    %v547 = vunpack.c.l.b16 %v250
    %v548 = vunpack.c.l.b16 %v251
    %v549 = vunpack.c.h.b16 %v251
    %v550 = vunpack.c.l.b16 %v252
    %v551 = vunpack.c.l.b16 %v253
    %v552 = vunpack.c.h.b16 %v253
    %v553 = vunpack.c.l.b16 %v254
    %v554 = vunpack.c.l.b16 %v255
    %v555 = vunpack.c.h.b16 %v255
    %v556 = vunpack.c.l.b16 %v256
    %v557 = vunpack.c.l.b16 %v257
    %v558 = vunpack.c.h.b16 %v257
    %v559 = vunpack.c.l.b16 %v258
    %v560 = vunpack.c.l.b16 %v259
    %v561 = vunpack.c.h.b16 %v259
    %v562 = vunpack.c.l.b16 %v260
    %v563 = vunpack.c.l.b16 %v261
    %v564 = vunpack.c.h.b16 %v261
    %v565 = vunpack.c.l.b16 %v262
    %v566 = vunpack.c.l.b16 %v263
    %v567 = vunpack.c.h.b16 %v263
    %v568 = vunpack.c.l.b16 %v264
    %v569 = vunpack.c.l.b16 %v265
    %v570 = vunpack.c.h.b16 %v265
    %v571 = vunpack.c.l.b16 %v266
    %v572 = vunpack.c.l.b16 %v267
    %v573 = vunpack.c.h.b16 %v267
    %v574 = vunpack.c.l.b16 %v268
    %v575 = vunpack.c.l.b16 %v269
    %v576 = vunpack.c.h.b16 %v269
    %v577 = vunpack.c.l.b16 %v270
    %v578 = vunpack.c.l.b16 %v271
    %v579 = vunpack.c.h.b16 %v271
    %v580 = vunpack.c.l.b16 %v272
    %v581 = vunpack.c.l.b16 %v273
    %v582 = vunpack.c.h.b16 %v273
    %v583 = vunpack.c.l.b16 %v274
    %v584 = vunpack.c.l.b16 %v275
    %v585 = vunpack.c.h.b16 %v275
    %v586 = vunpack.c.l.b16 %v276
    %v587 = vunpack.c.l.b16 %v277
    %v588 = vunpack.c.h.b16 %v277
    %v589 = vunpack.c.l.b16 %v278
    %v590 = vunpack.c.l.b16 %v279
    %v591 = vunpack.c.h.b16 %v279
    %v592 = vunpack.c.l.b16 %v280
    %v593 = vunpack.c.l.b16 %v281
    %v594 = vunpack.c.h.b16 %v281
    %v595 = vunpack.c.l.b16 %v282
    %v596 = vunpack.c.l.b16 %v283
    %v597 = vunpack.c.h.b16 %v283
    %v598 = vunpack.c.l.b16 %v284
    %v599 = vunpack.c.l.b16 %v285
    %v600 = vunpack.c.h.b16 %v285
    %v601 = vunpack.c.l.b16 %v286
    %v602 = vunpack.c.l.b16 %v287
    %v603 = vunpack.c.h.b16 %v287
    %v604 = vunpack.c.l.b16 %v288
    %v605 = vunpack.c.l.b16 %v289
    %v606 = vunpack.c.h.b16 %v289
    %v607 = vunpack.c.l.b16 %v290
    %v608 = vunpack.c.l.b16 %v291
    %v609 = vunpack.c.h.b16 %v291
    %v610 = vunpack.c.l.b16 %v292
    %v611 = vunpack.c.l.b16 %v293
    %v612 = vunpack.c.h.b16 %v293
    %v613 = vunpack.c.l.b16 %v294
    %v614 = vunpack.c.l.b16 %v295
    %v615 = vunpack.c.h.b16 %v295
    %v616 = vunpack.c.l.b16 %v296
    %v617 = vunpack.c.l.b16 %v297
    %v618 = vunpack.c.h.b16 %v297
    %v619 = vunpack.c.l.b16 %v298
    %v620 = vunpack.c.l.b16 %v299
    %v621 = vunpack.c.h.b16 %v299
    %v622 = vunpack.c.l.b16 %v300
    %v623 = vunpack.c.l.b16 %v301
    %v624 = vunpack.c.h.b16 %v301
    %v625 = vunpack.c.l.b16 %v302
    %v626 = vunpack.c.l.b16 %v303
    %v627 = vunpack.c.h.b16 %v303
    %v628 = vunpack.c.l.b16 %v304
    %v629 = vunpack.c.l.b16 %v305
    %v630 = vunpack.c.h.b16 %v305
    %v631 = vunpack.c.l.b16 %v306
    %v632 = vunpack.c.l.b16 %v307
    %v633 = vunpack.c.h.b16 %v307
    %v634 = vunpack.c.l.b16 %v308
    %v635 = vunpack.c.l.b16 %v309
    %v636 = vunpack.c.h.b16 %v309
    %v637 = vunpack.c.l.b16 %v310
    %v638 = vunpack.c.l.b16 %v311
    %v639 = vunpack.c.h.b16 %v311
    %v640 = vunpack.c.l.b16 %v312
    %v641 = vunpack.c.l.b16 %v313
    %v642 = vunpack.c.h.b16 %v313
    %v643 = vunpack.c.l.b16 %v314
    %v644 = vunpack.c.l.b16 %v315
    %v645 = vunpack.c.h.b16 %v315
    %v646 = vunpack.c.l.b16 %v316
    %v647 = vunpack.c.l.b16 %v317
    %v648 = vunpack.c.h.b16 %v317
    %v649 = vunpack.c.l.b16 %v318
    %v650 = vunpack.c.l.b16 %v319
    %v651 = vunpack.c.h.b16 %v319
    %v652 = vunpack.c.l.b16 %v320
    %v653 = vunpack.c.l.b16 %v321
    %v654 = vunpack.c.h.b16 %v321
    %v655 = vunpack.c.l.b16 %v322
    %v656 = vunpack.c.l.b16 %v323
    %v657 = vunpack.c.h.b16 %v323
    %v658 = vunpack.c.l.b16 %v324
    %v659 = vunpack.c.l.b16 %v325
    %v660 = vunpack.c.h.b16 %v325
    %v661 = vunpack.c.l.b16 %v326
    %v662 = vunpack.c.l.b16 %v327
    %v663 = vunpack.c.h.b16 %v327
    %v664 = vunpack.c.l.b16 %v328
    %v665 = vunpack.c.l.b16 %v329
    %v666 = vunpack.c.h.b16 %v329
    %v667 = vunpack.c.l.b16 %v330
    %v668 = vpack.c.b16 %v479, %v476
    %v669 = vpack.c.b16 %v480, %v477
    %v670 = vpack.c.b16 %v481, %v478
    %v671 = vpack.c.b16 %v485, %v482
    %v672 = vpack.c.b16 %v486, %v483
    %v673 = vpack.c.b16 %v487, %v484
    %v674 = vpack.c.b16 %v491, %v488
    %v675 = vpack.c.b16 %v492, %v489
    %v676 = vpack.c.b16 %v493, %v490
    %v677 = vpack.c.b16 %v497, %v494
    %v678 = vpack.c.b16 %v498, %v495
    %v679 = vpack.c.b16 %v499, %v496
    %v680 = vpack.c.b16 %v503, %v500
    %v681 = vpack.c.b16 %v504, %v501
    %v682 = vpack.c.b16 %v505, %v502
    %v683 = vpack.c.b16 %v509, %v506
    %v684 = vpack.c.b16 %v510, %v507
    %v685 = vpack.c.b16 %v511, %v508
    %v686 = vpack.c.b16 %v515, %v512
    %v687 = vpack.c.b16 %v516, %v513
    %v688 = vpack.c.b16 %v517, %v514
    %v689 = vpack.c.b16 %v521, %v518
    %v690 = vpack.c.b16 %v522, %v519
    %v691 = vpack.c.b16 %v523, %v520
    %v692 = vpack.c.b16 %v527, %v524
    %v693 = vpack.c.b16 %v528, %v525
    %v694 = vpack.c.b16 %v529, %v526
    %v695 = vpack.c.b16 %v533, %v530
    %v696 = vpack.c.b16 %v534, %v531
    %v697 = vpack.c.b16 %v535, %v532
    %v698 = vpack.c.b16 %v539, %v536
    %v699 = vpack.c.b16 %v540, %v537
    %v700 = vpack.c.b16 %v541, %v538
    %v701 = vpack.c.b16 %v545, %v542
    %v702 = vpack.c.b16 %v546, %v543
    %v703 = vpack.c.b16 %v547, %v544
    %v704 = vpack.c.b16 %v551, %v548
    %v705 = vpack.c.b16 %v552, %v549
    %v706 = vpack.c.b16 %v553, %v550
    %v707 = vpack.c.b16 %v557, %v554
    %v708 = vpack.c.b16 %v558, %v555
    %v709 = vpack.c.b16 %v559, %v556
    %v710 = vpack.c.b16 %v563, %v560
    %v711 = vpack.c.b16 %v564, %v561
    %v712 = vpack.c.b16 %v565, %v562
    %v713 = vpack.c.b16 %v569, %v566
    %v714 = vpack.c.b16 %v570, %v567
    %v715 = vpack.c.b16 %v571, %v568
    %v716 = vpack.c.b16 %v575, %v572
    %v717 = vpack.c.b16 %v576, %v573
    %v718 = vpack.c.b16 %v577, %v574
    %v719 = vpack.c.b16 %v581, %v578
    %v720 = vpack.c.b16 %v582, %v579
    %v721 = vpack.c.b16 %v583, %v580
    %v722 = vpack.c.b16 %v587, %v584
    %v723 = vpack.c.b16 %v588, %v585
    %v724 = vpack.c.b16 %v589, %v586
    %v725 = vpack.c.b16 %v593, %v590
    %v726 = vpack.c.b16 %v594, %v591
    %v727 = vpack.c.b16 %v595, %v592
    %v728 = vpack.c.b16 %v599, %v596
    %v729 = vpack.c.b16 %v600, %v597
    %v730 = vpack.c.b16 %v601, %v598
    %v731 = vpack.c.b16 %v605, %v602
    %v732 = vpack.c.b16 %v606, %v603
    %v733 = vpack.c.b16 %v607, %v604
    %v734 = vpack.c.b16 %v611, %v608
    %v735 = vpack.c.b16 %v612, %v609
    %v736 = vpack.c.b16 %v613, %v610
    %v737 = vpack.c.b16 %v617, %v614
    %v738 = vpack.c.b16 %v618, %v615
    %v739 = vpack.c.b16 %v619, %v616
    %v740 = vpack.c.b16 %v623, %v620
    %v741 = vpack.c.b16 %v624, %v621
    %v742 = vpack.c.b16 %v625, %v622
    %v743 = vpack.c.b16 %v629, %v626
    %v744 = vpack.c.b16 %v630, %v627
    %v745 = vpack.c.b16 %v631, %v628
    %v746 = vpack.c.b16 %v635, %v632
    %v747 = vpack.c.b16 %v636, %v633
    %v748 = vpack.c.b16 %v637, %v634
    %v749 = vpack.c.b16 %v641, %v638
    %v750 = vpack.c.b16 %v642, %v639
    %v751 = vpack.c.b16 %v643, %v640
    %v752 = vpack.c.b16 %v647, %v644
    %v753 = vpack.c.b16 %v648, %v645
    %v754 = vpack.c.b16 %v649, %v646
    %v755 = vpack.c.b16 %v653, %v650
    %v756 = vpack.c.b16 %v654, %v651
    %v757 = vpack.c.b16 %v655, %v652
    %v758 = vpack.c.b16 %v659, %v656
    %v759 = vpack.c.b16 %v660, %v657
    %v760 = vpack.c.b16 %v661, %v658
    %v761 = vpack.c.b16 %v665, %v662
    %v762 = vpack.c.b16 %v666, %v663
    %v763 = vpack.c.b16 %v667, %v664
    %860 = vmatprep.subr.bf16.mxu0 %v690
    %861 = vmatpush1.bf16.msra.mxu0 %v689
    %862 = vmatprep.subr.bf16.mxu0 %v687
    %863 = vmatpush1.bf16.msra.mxu0 %v686
    %864 = vmatprep.subr.bf16.mxu0 %v684
    %865 = vmatpush1.bf16.msra.mxu0 %v683
    %866 = vmatprep.subr.bf16.mxu0 %v681
    %867 = vmatpush1.bf16.msra.mxu0 %v680
    %868 = vmatprep.subr.bf16.mxu0 %v678
    %869 = vmatpush1.bf16.msra.mxu0 %v677
    %870 = vmatprep.subr.bf16.mxu0 %v675
    %871 = vmatpush1.bf16.msra.mxu0 %v674
    %872 = vmatprep.subr.bf16.mxu0 %v672
    %873 = vmatpush1.bf16.msra.mxu0 %v671
    %874 = vmatprep.subr.bf16.mxu0 %v669
    %875 = vmatpush1.bf16.msra.mxu0 %v668
    %876 = vmatprep.subr.bf16.mxu0 %v714
    %877 = vmatpush2.bf16.msra.mxu0 %v713
    %878 = vmatprep.subr.bf16.mxu0 %v711
    %879 = vmatpush2.bf16.msra.mxu0 %v710
    %880 = vmatprep.subr.bf16.mxu0 %v708
    %881 = vmatpush2.bf16.msra.mxu0 %v707
    %882 = vmatprep.subr.bf16.mxu0 %v705
    %883 = vmatpush2.bf16.msra.mxu0 %v704
    %884 = vmatprep.subr.bf16.mxu0 %v702
    %885 = vmatpush2.bf16.msra.mxu0 %v701
    %886 = vmatprep.subr.bf16.mxu0 %v699
    %887 = vmatpush2.bf16.msra.mxu0 %v698
    %888 = vmatprep.subr.bf16.mxu0 %v696
    %889 = vmatpush2.bf16.msra.mxu0 %v695
    %890 = vmatprep.subr.bf16.mxu0 %v693
    %891 = vmatpush2.bf16.msra.mxu0 %v692
    %892 = vmatprep.mubr.bf16.mxu0 %v200
    %893 = vmatmul.mubr.bf16.gmra.mxu0 %v199
    %v894 = vpop.f32.mrf.mxu0
    %v895 = vadd.f32 %v336, %v894
    %v896 = vpop.f32.mrf.mxu0
    %v897 = vadd.f32 %v340, %v896
    %v898 = vpop.f32.mrf.mxu0
    %v899 = vpop.f32.mrf.mxu0
    %900 = vdwg.mxu0
    %901 = vmatprep.subr.bf16.mxu0 %v738
    %902 = vmatpush1.bf16.msra.mxu0 %v737
    %903 = vmatprep.subr.bf16.mxu0 %v735
    %904 = vmatpush1.bf16.msra.mxu0 %v734
    %905 = vmatprep.subr.bf16.mxu0 %v732
    %906 = vmatpush1.bf16.msra.mxu0 %v731
    %907 = vmatprep.subr.bf16.mxu0 %v729
    %908 = vmatpush1.bf16.msra.mxu0 %v728
    %909 = vmatprep.subr.bf16.mxu0 %v726
    %910 = vmatpush1.bf16.msra.mxu0 %v725
    %911 = vmatprep.subr.bf16.mxu0 %v723
    %912 = vmatpush1.bf16.msra.mxu0 %v722
    %913 = vmatprep.subr.bf16.mxu0 %v720
    %914 = vmatpush1.bf16.msra.mxu0 %v719
    %915 = vmatprep.subr.bf16.mxu0 %v717
    %916 = vmatpush1.bf16.msra.mxu0 %v716
    %917 = vmatprep.subr.bf16.mxu0 %v762
    %918 = vmatpush2.bf16.msra.mxu0 %v761
    %919 = vmatprep.subr.bf16.mxu0 %v759
    %920 = vmatpush2.bf16.msra.mxu0 %v758
    %921 = vmatprep.subr.bf16.mxu0 %v756
    %922 = vmatpush2.bf16.msra.mxu0 %v755
    %923 = vmatprep.subr.bf16.mxu0 %v753
    %924 = vmatpush2.bf16.msra.mxu0 %v752
    %925 = vmatprep.subr.bf16.mxu0 %v750
    %926 = vmatpush2.bf16.msra.mxu0 %v749
    %927 = vmatprep.subr.bf16.mxu0 %v747
    %928 = vmatpush2.bf16.msra.mxu0 %v746
    %929 = vmatprep.subr.bf16.mxu0 %v744
    %930 = vmatpush2.bf16.msra.mxu0 %v743
    %931 = vmatprep.subr.bf16.mxu0 %v741
    %932 = vmatpush2.bf16.msra.mxu0 %v740
    %933 = vmatprep.mubr.bf16.mxu0 %v202
    %934 = vmatmul.mubr.bf16.gmra.mxu0 %v201
    %v935 = vpop.f32.mrf.mxu0
    %v936 = vadd.f32 %v895, %v935
    %v937 = vpop.f32.mrf.mxu0
    %v938 = vadd.f32 %v897, %v937
    %v939 = vpop.f32.mrf.mxu0
    %v940 = vpop.f32.mrf.mxu0
    %941 = vdwg.mxu0
    %942 = vmatprep.subr.bf16.mxu0 0
    %943 = vmatpush1.bf16.msra.mxu0 %v691
    %944 = vmatprep.subr.bf16.mxu0 0
    %945 = vmatpush1.bf16.msra.mxu0 %v688
    %946 = vmatprep.subr.bf16.mxu0 0
    %947 = vmatpush1.bf16.msra.mxu0 %v685
    %948 = vmatprep.subr.bf16.mxu0 0
    %949 = vmatpush1.bf16.msra.mxu0 %v682
    %950 = vmatprep.subr.bf16.mxu0 0
    %951 = vmatpush1.bf16.msra.mxu0 %v679
    %952 = vmatprep.subr.bf16.mxu0 0
    %953 = vmatpush1.bf16.msra.mxu0 %v676
    %954 = vmatprep.subr.bf16.mxu0 0
    %955 = vmatpush1.bf16.msra.mxu0 %v673
    %956 = vmatprep.subr.bf16.mxu0 0
    %957 = vmatpush1.bf16.msra.mxu0 %v670
    %958 = vmatprep.subr.bf16.mxu0 0
    %959 = vmatpush2.bf16.msra.mxu0 %v715
    %960 = vmatprep.subr.bf16.mxu0 0
    %961 = vmatpush2.bf16.msra.mxu0 %v712
    %962 = vmatprep.subr.bf16.mxu0 0
    %963 = vmatpush2.bf16.msra.mxu0 %v709
    %964 = vmatprep.subr.bf16.mxu0 0
    %965 = vmatpush2.bf16.msra.mxu0 %v706
    %966 = vmatprep.subr.bf16.mxu0 0
    %967 = vmatpush2.bf16.msra.mxu0 %v703
    %968 = vmatprep.subr.bf16.mxu0 0
    %969 = vmatpush2.bf16.msra.mxu0 %v700
    %970 = vmatprep.subr.bf16.mxu0 0
    %971 = vmatpush2.bf16.msra.mxu0 %v697
    %972 = vmatprep.subr.bf16.mxu0 0
    %973 = vmatpush2.bf16.msra.mxu0 %v694
    %974 = vmatprep.mubr.bf16.mxu0 %v200
    %975 = vmatmul.mubr.bf16.gmra.mxu0 %v199
    %v976 = vpop.f32.mrf.mxu0
    %v977 = vadd.f32 %v344, %v976
    %v978 = vpop.f32.mrf.mxu0
    %v979 = vpop.f32.mrf.mxu0
    %v980 = vpop.f32.mrf.mxu0
    %981 = vdwg.mxu0
    %982 = vmatprep.subr.bf16.mxu0 0
    %983 = vmatpush1.bf16.msra.mxu0 %v739
    %984 = vmatprep.subr.bf16.mxu0 0
    %985 = vmatpush1.bf16.msra.mxu0 %v736
    %986 = vmatprep.subr.bf16.mxu0 0
    %987 = vmatpush1.bf16.msra.mxu0 %v733
    %988 = vmatprep.subr.bf16.mxu0 0
    %989 = vmatpush1.bf16.msra.mxu0 %v730
    %990 = vmatprep.subr.bf16.mxu0 0
    %991 = vmatpush1.bf16.msra.mxu0 %v727
    %992 = vmatprep.subr.bf16.mxu0 0
    %993 = vmatpush1.bf16.msra.mxu0 %v724
    %994 = vmatprep.subr.bf16.mxu0 0
    %995 = vmatpush1.bf16.msra.mxu0 %v721
    %996 = vmatprep.subr.bf16.mxu0 0
    %997 = vmatpush1.bf16.msra.mxu0 %v718
    %998 = vmatprep.subr.bf16.mxu0 0
    %999 = vmatpush2.bf16.msra.mxu0 %v763
    %1000 = vmatprep.subr.bf16.mxu0 0
    %1001 = vmatpush2.bf16.msra.mxu0 %v760
    %1002 = vmatprep.subr.bf16.mxu0 0
    %1003 = vmatpush2.bf16.msra.mxu0 %v757
    %1004 = vmatprep.subr.bf16.mxu0 0
    %1005 = vmatpush2.bf16.msra.mxu0 %v754
    %1006 = vmatprep.subr.bf16.mxu0 0
    %1007 = vmatpush2.bf16.msra.mxu0 %v751
    %1008 = vmatprep.subr.bf16.mxu0 0
    %1009 = vmatpush2.bf16.msra.mxu0 %v748
    %1010 = vmatprep.subr.bf16.mxu0 0
    %1011 = vmatpush2.bf16.msra.mxu0 %v745
    %1012 = vmatprep.subr.bf16.mxu0 0
    %1013 = vmatpush2.bf16.msra.mxu0 %v742
    %1014 = vmatprep.mubr.bf16.mxu0 %v202
    %1015 = vmatmul.mubr.bf16.gmra.mxu0 %v201
    %v1016 = vpop.f32.mrf.mxu0
    %v1017 = vadd.f32 %v977, %v1016
    %v1018 = vpop.f32.mrf.mxu0
    %v1019 = vpop.f32.mrf.mxu0
    %v1020 = vpop.f32.mrf.mxu0
    %1021 = vdwg.mxu0
    %v1022 = vmax.f32 %v936, 0.0
    %v1023 = vmax.f32 %v938, 0.0
    %v1024 = vmax.f32 %v1017, 0.0
    %v1025 = vpack.c.bf16 %v1022, %v1022
    %v1026 = vpack.c.bf16 %v1023, %v1023
    %v1027 = vpack.c.bf16 %v1024, %v1024
    %v1028 = vld [vmem:[#allocation7] sm:$0xf]
    %v1029 = vld [vmem:[#allocation7 + $0x4] sm:$0xf]
    %v1030 = vld [vmem:[#allocation7 + $0x8] sm:$0xf]
    %v1031 = vld [vmem:[#allocation7 + $0xc] sm:$0xf]
    %v1032 = vld [vmem:[#allocation7 + $0x10] sm:$0xf]
    %v1033 = vld [vmem:[#allocation7 + $0x14] sm:$0xf]
    %v1034 = vld [vmem:[#allocation7 + $0x18] sm:$0xf]
    %v1035 = vld [vmem:[#allocation7 + $0x1c] sm:$0xf]
    %v1036 = vld [vmem:[#allocation7 + $0x20] sm:$0xf]
    %v1037 = vld [vmem:[#allocation7 + $0x24] sm:$0xf]
    %v1038 = vld [vmem:[#allocation7 + $0x28] sm:$0xf]
    %v1039 = vld [vmem:[#allocation7 + $0x2c] sm:$0xf]
    %v1040 = vld [vmem:[#allocation7 + $0x30] sm:$0xf]
    %v1041 = vld [vmem:[#allocation7 + $0x34] sm:$0xf]
    %v1042 = vld [vmem:[#allocation7 + $0x38] sm:$0xf]
    %v1043 = vld [vmem:[#allocation7 + $0x3c] sm:$0xf]
    %v1044 = vld [vmem:[#allocation7 + $0x40] sm:$0xf]
    %v1045 = vld [vmem:[#allocation7 + $0x44] sm:$0xf]
    %v1046 = vld [vmem:[#allocation7 + $0x48] sm:$0xf]
    %v1047 = vld [vmem:[#allocation7 + $0x4c] sm:$0xf]
    %v1048 = vld [vmem:[#allocation7 + $0x50] sm:$0xf]
    %v1049 = vld [vmem:[#allocation7 + $0x54] sm:$0xf]
    %v1050 = vld [vmem:[#allocation7 + $0x58] sm:$0xf]
    %v1051 = vld [vmem:[#allocation7 + $0x5c] sm:$0xf]
    %v1052 = vld [vmem:[#allocation7 + $0x60] sm:$0xf]
    %v1053 = vld [vmem:[#allocation7 + $0x64] sm:$0xf]
    %v1054 = vld [vmem:[#allocation7 + $0x68] sm:$0xf]
    %v1055 = vld [vmem:[#allocation7 + $0x6c] sm:$0xf]
    %v1056 = vld [vmem:[#allocation7 + $0x70] sm:$0xf]
    %v1057 = vld [vmem:[#allocation7 + $0x74] sm:$0xf]
    %v1058 = vld [vmem:[#allocation7 + $0x78] sm:$0xf]
    %v1059 = vld [vmem:[#allocation7 + $0x7c] sm:$0xf]
    %v1060 = vld [vmem:[#allocation7 + $0x80] sm:$0xf]
    %v1061 = vld [vmem:[#allocation7 + $0x84] sm:$0xf]
    %v1062 = vld [vmem:[#allocation7 + $0x88] sm:$0xf]
    %v1063 = vld [vmem:[#allocation7 + $0x8c] sm:$0xf]
    %v1064 = vld [vmem:[#allocation7 + $0x90] sm:$0xf]
    %v1065 = vld [vmem:[#allocation7 + $0x94] sm:$0xf]
    %v1066 = vld [vmem:[#allocation7 + $0x98] sm:$0xf]
    %v1067 = vld [vmem:[#allocation7 + $0x9c] sm:$0xf]
    %v1068 = vld [vmem:[#allocation7 + $0xa0] sm:$0xf]
    %v1069 = vld [vmem:[#allocation7 + $0xa4] sm:$0xf]
    %v1070 = vld [vmem:[#allocation7 + $0xa8] sm:$0xf]
    %v1071 = vld [vmem:[#allocation7 + $0xac] sm:$0xf]
    %v1072 = vld [vmem:[#allocation7 + $0xb0] sm:$0xf]
    %v1073 = vld [vmem:[#allocation7 + $0xb4] sm:$0xf]
    %v1074 = vld [vmem:[#allocation7 + $0xb8] sm:$0xf]
    %v1075 = vld [vmem:[#allocation7 + $0xbc] sm:$0xf]
    %v1076 = vld [vmem:[%s6] sm:$0x1]
    %v1077 = vlaneseq
    %v1078 = vshrl.u32 %v1077, 7
    %v1079 = vsub.s32 0, %v1078
    %v1080 = vrot.slane %v1076, %v1079
    %v1129 = vunpack.c.l.b16 %v1028
    %v1130 = vunpack.c.l.b16 %v1029
    %v1131 = vunpack.c.l.b16 %v1030
    %v1132 = vunpack.c.l.b16 %v1031
    %v1133 = vunpack.c.l.b16 %v1032
    %v1134 = vunpack.c.l.b16 %v1033
    %v1135 = vunpack.c.l.b16 %v1034
    %v1136 = vunpack.c.l.b16 %v1035
    %v1137 = vunpack.c.l.b16 %v1036
    %v1138 = vunpack.c.l.b16 %v1037
    %v1139 = vunpack.c.l.b16 %v1038
    %v1140 = vunpack.c.l.b16 %v1039
    %v1141 = vunpack.c.l.b16 %v1040
    %v1142 = vunpack.c.l.b16 %v1041
    %v1143 = vunpack.c.l.b16 %v1042
    %v1144 = vunpack.c.l.b16 %v1043
    %v1145 = vunpack.c.l.b16 %v1044
    %v1146 = vunpack.c.l.b16 %v1045
    %v1147 = vunpack.c.l.b16 %v1046
    %v1148 = vunpack.c.l.b16 %v1047
    %v1149 = vunpack.c.l.b16 %v1048
    %v1150 = vunpack.c.l.b16 %v1049
    %v1151 = vunpack.c.l.b16 %v1050
    %v1152 = vunpack.c.l.b16 %v1051
    %v1153 = vunpack.c.l.b16 %v1052
    %v1154 = vunpack.c.l.b16 %v1053
    %v1155 = vunpack.c.l.b16 %v1054
    %v1156 = vunpack.c.l.b16 %v1055
    %v1157 = vunpack.c.l.b16 %v1056
    %v1158 = vunpack.c.l.b16 %v1057
    %v1159 = vunpack.c.l.b16 %v1058
    %v1160 = vunpack.c.l.b16 %v1059
    %v1161 = vunpack.c.l.b16 %v1060
    %v1162 = vunpack.c.l.b16 %v1061
    %v1163 = vunpack.c.l.b16 %v1062
    %v1164 = vunpack.c.l.b16 %v1063
    %v1165 = vunpack.c.l.b16 %v1064
    %v1166 = vunpack.c.l.b16 %v1065
    %v1167 = vunpack.c.l.b16 %v1066
    %v1168 = vunpack.c.l.b16 %v1067
    %v1169 = vunpack.c.l.b16 %v1068
    %v1170 = vunpack.c.l.b16 %v1069
    %v1171 = vunpack.c.l.b16 %v1070
    %v1172 = vunpack.c.l.b16 %v1071
    %v1173 = vunpack.c.l.b16 %v1072
    %v1174 = vunpack.c.l.b16 %v1073
    %v1175 = vunpack.c.l.b16 %v1074
    %v1176 = vunpack.c.l.b16 %v1075
    %v1177 = vpack.c.b16 %v1130, %v1129
    %v1178 = vpack.c.b16 %v1132, %v1131
    %v1179 = vpack.c.b16 %v1134, %v1133
    %v1180 = vpack.c.b16 %v1136, %v1135
    %v1181 = vpack.c.b16 %v1138, %v1137
    %v1182 = vpack.c.b16 %v1140, %v1139
    %v1183 = vpack.c.b16 %v1142, %v1141
    %v1184 = vpack.c.b16 %v1144, %v1143
    %v1185 = vpack.c.b16 %v1146, %v1145
    %v1186 = vpack.c.b16 %v1148, %v1147
    %v1187 = vpack.c.b16 %v1150, %v1149
    %v1188 = vpack.c.b16 %v1152, %v1151
    %v1189 = vpack.c.b16 %v1154, %v1153
    %v1190 = vpack.c.b16 %v1156, %v1155
    %v1191 = vpack.c.b16 %v1158, %v1157
    %v1192 = vpack.c.b16 %v1160, %v1159
    %v1193 = vpack.c.b16 %v1162, %v1161
    %v1194 = vpack.c.b16 %v1164, %v1163
    %v1195 = vpack.c.b16 %v1166, %v1165
    %v1196 = vpack.c.b16 %v1168, %v1167
    %v1197 = vpack.c.b16 %v1170, %v1169
    %v1198 = vpack.c.b16 %v1172, %v1171
    %v1199 = vpack.c.b16 %v1174, %v1173
    %v1200 = vpack.c.b16 %v1176, %v1175
    %1225 = vmatprep.subr.bf16.mxu0 0
    %1226 = vmatpush1.bf16.msra.mxu0 %v1184
    %1227 = vmatprep.subr.bf16.mxu0 0
    %1228 = vmatpush1.bf16.msra.mxu0 %v1183
    %1229 = vmatprep.subr.bf16.mxu0 0
    %1230 = vmatpush1.bf16.msra.mxu0 %v1182
    %1231 = vmatprep.subr.bf16.mxu0 0
    %1232 = vmatpush1.bf16.msra.mxu0 %v1181
    %1233 = vmatprep.subr.bf16.mxu0 0
    %1234 = vmatpush1.bf16.msra.mxu0 %v1180
    %1235 = vmatprep.subr.bf16.mxu0 0
    %1236 = vmatpush1.bf16.msra.mxu0 %v1179
    %1237 = vmatprep.subr.bf16.mxu0 0
    %1238 = vmatpush1.bf16.msra.mxu0 %v1178
    %1239 = vmatprep.subr.bf16.mxu0 0
    %1240 = vmatpush1.bf16.msra.mxu0 %v1177
    %1241 = vmatprep.subr.bf16.mxu0 0
    %1242 = vmatpush2.bf16.msra.mxu0 %v1192
    %1243 = vmatprep.subr.bf16.mxu0 0
    %1244 = vmatpush2.bf16.msra.mxu0 %v1191
    %1245 = vmatprep.subr.bf16.mxu0 0
    %1246 = vmatpush2.bf16.msra.mxu0 %v1190
    %1247 = vmatprep.subr.bf16.mxu0 0
    %1248 = vmatpush2.bf16.msra.mxu0 %v1189
    %1249 = vmatprep.subr.bf16.mxu0 0
    %1250 = vmatpush2.bf16.msra.mxu0 %v1188
    %1251 = vmatprep.subr.bf16.mxu0 0
    %1252 = vmatpush2.bf16.msra.mxu0 %v1187
    %1253 = vmatprep.subr.bf16.mxu0 0
    %1254 = vmatpush2.bf16.msra.mxu0 %v1186
    %1255 = vmatprep.subr.bf16.mxu0 0
    %1256 = vmatpush2.bf16.msra.mxu0 %v1185
    %1257 = vmatprep.mubr.bf16.mxu0 %v1026
    %1258 = vmatmul.mubr.bf16.gmra.mxu0 %v1025
    %v1259 = vpop.f32.mrf.mxu0
    %v1260 = vadd.f32 %v1080, %v1259
    %v1261 = vpop.f32.mrf.mxu0
    %v1262 = vpop.f32.mrf.mxu0
    %v1263 = vpop.f32.mrf.mxu0
    %1264 = vdwg.mxu0
    %1265 = vmatprep.subr.bf16.mxu0 0
    %1266 = vmatpush1.bf16.msra.mxu0 %v1200
    %1267 = vmatprep.subr.bf16.mxu0 0
    %1268 = vmatpush1.bf16.msra.mxu0 %v1199
    %1269 = vmatprep.subr.bf16.mxu0 0
    %1270 = vmatpush1.bf16.msra.mxu0 %v1198
    %1271 = vmatprep.subr.bf16.mxu0 0
    %1272 = vmatpush1.bf16.msra.mxu0 %v1197
    %1273 = vmatprep.subr.bf16.mxu0 0
    %1274 = vmatpush1.bf16.msra.mxu0 %v1196
    %1275 = vmatprep.subr.bf16.mxu0 0
    %1276 = vmatpush1.bf16.msra.mxu0 %v1195
    %1277 = vmatprep.subr.bf16.mxu0 0
    %1278 = vmatpush1.bf16.msra.mxu0 %v1194
    %1279 = vmatprep.subr.bf16.mxu0 0
    %1280 = vmatpush1.bf16.msra.mxu0 %v1193
    %1281 = vmatprep.subr.bf16.mxu0 0
    %1282 = vmatpush2.bf16.msra.mxu0 0
    %1283 = vmatprep.subr.bf16.mxu0 0
    %1284 = vmatpush2.bf16.msra.mxu0 0
    %1285 = vmatprep.subr.bf16.mxu0 0
    %1286 = vmatpush2.bf16.msra.mxu0 0
    %1287 = vmatprep.subr.bf16.mxu0 0
    %1288 = vmatpush2.bf16.msra.mxu0 0
    %1289 = vmatprep.subr.bf16.mxu0 0
    %1290 = vmatpush2.bf16.msra.mxu0 0
    %1291 = vmatprep.subr.bf16.mxu0 0
    %1292 = vmatpush2.bf16.msra.mxu0 0
    %1293 = vmatprep.subr.bf16.mxu0 0
    %1294 = vmatpush2.bf16.msra.mxu0 0
    %1295 = vmatprep.subr.bf16.mxu0 0
    %1296 = vmatpush2.bf16.msra.mxu0 0
    %1297 = vmatprep.mubr.bf16.mxu0 0
    %1298 = vmatmul.mubr.bf16.gmra.mxu0 %v1027
    %v1299 = vpop.f32.mrf.mxu0
    %v1300 = vadd.f32 %v1260, %v1299
    %v1301 = vpop.f32.mrf.mxu0
    %v1302 = vpop.f32.mrf.mxu0
    %v1303 = vpop.f32.mrf.mxu0
    %1304 = vdwg.mxu0
    %v1305 = vld [vmem:[%s6 + $0x1] sm:$0x1]
    %v1306 = vlaneseq
    %v1307 = vshrl.u32 %v1306, 7
    %v1308 = vsub.s32 0, %v1307
    %v1309 = vrot.slane %v1305, %v1308
    %v1310 = vmax.f32 %v1300, %v1309
    %v1311 = vld [vmem:[%s6 + $0x2] sm:$0x1]
    %v1312 = vlaneseq
    %v1313 = vshrl.u32 %v1312, 7
    %v1314 = vsub.s32 0, %v1313
    %v1315 = vrot.slane %v1311, %v1314
    %v1316 = vmin.f32 %v1310, %v1315
    %1317 = vst [vmem:[#allocation8] sm:$0xff] %v1316
    // Predicated region
    $region42: #{tpu_custom_call.1} parent=1 // pred_check
      _
    $region43: #{tpu_custom_call.1} parent=1 // pred_check_branch
      %1319 = sbr.rel (0) target = $region45
    $region44: #{tpu_custom_call.1} parent=1 // pred_region
      %s1321 = ssub.s32 128, 128
      %1322 = vsyncadd [#allocation4], %s1321
      %s1324 = sshll.u32 [#allocation8], 4
      %s1325 = int_to_ptr.vmem [resolvable:$true] %s1324
      %1327 = dma.vmem_to_hbm [thread:$0]  %s1325, 128, %s7, [#allocation4]
    $region45: #{tpu_custom_call.1} parent=1 // pred_fallthru
      _
    // Predicated region
    $region46: #{tpu_custom_call.1} parent=1 // pred_check
      _
    $region47: #{tpu_custom_call.1} parent=1 // pred_check_branch
      %1329 = sbr.rel (0) target = $region49
    $region48: #{tpu_custom_call.1} parent=1 // pred_region
      %1330 = dma.done [#allocation4], 128
    $region49: #{tpu_custom_call.1} parent=1 // pred_fallthru
      _
    %1331 = vsyncpa [#allocation3], 1
    %1332 = vsyncpa [#allocation6], 1
    %1333 = vsyncpa [#allocation4], 1

</llo_original>
